<compile_context>
chip_gen: v6e
topology: v6e:2x2x1
jax: 0.10.0
libtpu: 0.0.40
codegen_flags: <defaults>
</compile_context>

<pallas_src>
import jax
import jax.numpy as jnp
from jax.experimental import pallas as pl
from jax.experimental.pallas import tpu as pltpu


def _round_up(x: int, m: int) -> int:
    return ((x + m - 1) // m) * m


def _cdiv(a: int, b: int) -> int:
    return -(-a // b)


def mylinear_kernel(x_ref, w_ref, b_ref, o_ref):
    k = pl.program_id(2)
    last_k = pl.num_programs(2) - 1

    # Hot loop: one MXU matmul per step, f32 accumulation.
    part = jnp.dot(x_ref[...], w_ref[...], preferred_element_type=jnp.float32)

    @pl.when(k == 0)
    def _seed():
        # Seed the resident output block with the broadcast bias + first
        # partial product — no zero-fill pass, no epilogue bias add.
        o_ref[...] = b_ref[...] + part

    @pl.when(k > 0)
    def _accumulate():
        o_ref[...] += part

    @pl.when(k == last_k)
    def _epilogue():
        # ReLU once per output tile.
        o_ref[...] = jnp.maximum(o_ref[...], 0.0)


def mylinear(x, weight, bias, *, tm=512, tn=512, tk=1024, use_bf16=False):
    """relu(x @ weight + bias).

    x: (B, in_units) f32, weight: (in_units, out_units) f32, bias: (out_units,).
    """
    B, K = x.shape
    Kw, N = weight.shape
    assert K == Kw, "x / weight contraction dims must match"
    assert bias.shape == (N,)

    # TODO(synk): in a real layer, pre-pad / pre-cast `weight` once at parameter
    # setup instead of per forward call.
    if use_bf16:
        x = x.astype(jnp.bfloat16)
        weight = weight.astype(jnp.bfloat16)

    # --- K (contraction) tiling. Garbage in the contraction window corrupts
    #     results, so either take all of K in one resident pass (no padding) or
    #     zero-pad K up to a tile multiple.
    if K <= tk:
        tk, Kp = K, K
    else:
        Kp = _round_up(K, tk)
    if Kp != K:
        x = jnp.pad(x, ((0, 0), (0, Kp - K)))
        weight = jnp.pad(weight, ((0, Kp - K), (0, 0)))

    # --- M tiling: weight-stationary when the batch fits one tile (full-dim
    #     block is always layout-legal); otherwise default tm + ragged last block.
    if B <= 1024:
        tm = B

    # --- N tiling: lane-dense tiles; ragged last block handled by the grid.
    if N <= tn:
        tn = N
    grid_m = _cdiv(B, tm)
    if grid_m == 1 and N >= 256 and _cdiv(N, tn) < 2:
        # Keep >= 2 N-tiles so both v7x TensorCores get work when the M axis
        # has collapsed to a single tile.
        tn = _round_up(_cdiv(N, 2), 128)

    grid = (grid_m, _cdiv(N, tn), Kp // tk)
    b2d = bias.reshape(1, N)

    bytes_accessed = (
        x.size * x.dtype.itemsize
        + weight.size * weight.dtype.itemsize
        + B * N * 4
        + N * 4
    )
    cost = pl.CostEstimate(
        flops=2 * B * N * Kp, transcendentals=0, bytes_accessed=bytes_accessed
    )

    return pl.pallas_call(
        mylinear_kernel,
        out_shape=jax.ShapeDtypeStruct((B, N), jnp.float32),
        grid_spec=pltpu.PrefetchScalarGridSpec(
            num_scalar_prefetch=0,
            grid=grid,
            in_specs=[
                pl.BlockSpec((tm, tk), lambda i, j, k: (i, k)),   # X tile
                pl.BlockSpec((tk, tn), lambda i, j, k: (k, j)),   # W tile
                pl.BlockSpec((1, tn), lambda i, j, k: (0, j)),    # bias per N tile
            ],
            # Output block resident across k (index_map ignores k) -> accumulator.
            out_specs=pl.BlockSpec((tm, tn), lambda i, j, k: (i, j)),
        ),
        compiler_params=pltpu.CompilerParams(
            dimension_semantics=("parallel", "parallel", "arbitrary"),
            vmem_limit_bytes=48 * 1024 * 1024,  # safe on v5e/v6e (128 MiB) and v7x (64 MiB)
        ),
        cost_estimate=cost,
    )(x, weight, b2d)


if __name__ == "__main__":
    key = jax.random.PRNGKey(0)
    kx, kw, kb = jax.random.split(key, 3)

    # Shapes from the chapter's usage: linear = MyLinear(5, 3); linear(torch.rand(2, 5)).
    B, K, N = 2, 5, 3
    x = jax.random.uniform(kx, (B, K), dtype=jnp.float32)
    w = jax.random.uniform(kw, (K, N), dtype=jnp.float32)       # torch.rand-like init
    b = jax.random.normal(kb, (N,), dtype=jnp.float32)          # torch.randn-like init
    out = jax.block_until_ready(mylinear(x, w, b))
    ref = jnp.maximum(x @ w + b, 0.0)
    assert out.shape == (B, N)
    assert jnp.allclose(out, ref, atol=1e-5, rtol=1e-5)

    # Exercise the real multi-block path: weight-stationary tm=B, 2 N-tiles
    # (ragged last N block), 2 K steps with K zero-padded 1536 -> 2048,
    # pl.when seed/accumulate/epilogue all active.
    B2, K2, N2 = 50, 1536, 640
    x2 = jax.random.normal(kx, (B2, K2), dtype=jnp.float32)
    w2 = jax.random.uniform(kw, (K2, N2), dtype=jnp.float32)
    b2 = jax.random.normal(kb, (N2,), dtype=jnp.float32)
    out2 = jax.block_until_ready(mylinear(x2, w2, b2))
    ref2 = jnp.maximum(x2 @ w2 + b2, 0.0)
    assert out2.shape == (B2, N2)
    assert jnp.allclose(out2, ref2, atol=5e-2, rtol=1e-2)

    print("KERNEL_OK")
</pallas_src>

<mosaic_0001>
module attributes {stable_mosaic.version = 11 : i64} {
  func.func @mylinear_kernel(%arg0: i32, %arg1: i32, %arg2: i32, %arg3: memref<2x5xf32, #tpu.memory_space<vmem>>, %arg4: memref<5x3xf32, #tpu.memory_space<vmem>>, %arg5: memref<1x3xf32, #tpu.memory_space<vmem>>, %arg6: memref<2x3xf32, #tpu.memory_space<vmem>>) attributes {dimension_semantics = [#tpu.dimension_semantics<parallel>, #tpu.dimension_semantics<parallel>, #tpu.dimension_semantics<arbitrary>], iteration_bounds = array<i64: 1, 1, 1>, scalar_prefetch = 0 : i64, scratch_operands = 0 : i64, tpu.core_type = #tpu.core_type<tc>, window_params = [{transform_indices = @transform_0, window_bounds = array<i64: 2, 5>}, {transform_indices = @transform_1, window_bounds = array<i64: 5, 3>}, {transform_indices = @transform_2, window_bounds = array<i64: 1, 3>}, {transform_indices = @transform_3, window_bounds = array<i64: 2, 3>}]} {
    %c0 = arith.constant 0 : index
    %c0_0 = arith.constant 0 : index
    %0 = vector.load %arg3[%c0, %c0_0] : memref<2x5xf32, #tpu.memory_space<vmem>>, vector<2x5xf32>
    %c0_1 = arith.constant 0 : index
    %c0_2 = arith.constant 0 : index
    %1 = vector.load %arg4[%c0_1, %c0_2] : memref<5x3xf32, #tpu.memory_space<vmem>>, vector<5x3xf32>
    %cst = arith.constant dense<0.000000e+00> : vector<2x3xf32>
    %2 = tpu.matmul %0, %1, %cst {dimension_numbers = #tpu.dot_dimension_numbers<[1], [0], [0], [1], [0, 0, 1, 1], [], []>} : vector<2x5xf32>, vector<5x3xf32>, vector<2x3xf32> -> vector<2x3xf32>
    %c0_i32 = arith.constant 0 : i32
    %3 = arith.cmpi eq, %arg2, %c0_i32 : i32
    %4 = arith.extui %3 : i1 to i32
    %c0_i32_3 = arith.constant 0 : i32
    %5 = arith.cmpi ne, %4, %c0_i32_3 : i32
    scf.if %5 {
      %c0_8 = arith.constant 0 : index
      %c0_9 = arith.constant 0 : index
      %12 = vector.load %arg5[%c0_8, %c0_9] : memref<1x3xf32, #tpu.memory_space<vmem>>, vector<1x3xf32>
      %13 = vector.broadcast %12 : vector<1x3xf32> to vector<2x3xf32>
      %14 = arith.addf %13, %2 : vector<2x3xf32>
      %c0_10 = arith.constant 0 : index
      %c0_11 = arith.constant 0 : index
      %15 = vector.load %arg6[%c0_10, %c0_11] : memref<2x3xf32, #tpu.memory_space<vmem>>, vector<2x3xf32>
      tpu.vector_store %arg6[%c0_10, %c0_11], %14 {strides = array<i32>} : memref<2x3xf32, #tpu.memory_space<vmem>>, vector<2x3xf32>,
    } else {
    }
    %c0_i32_4 = arith.constant 0 : i32
    %6 = arith.cmpi sgt, %arg2, %c0_i32_4 : i32
    %7 = arith.extui %6 : i1 to i32
    %c0_i32_5 = arith.constant 0 : i32
    %8 = arith.cmpi ne, %7, %c0_i32_5 : i32
    scf.if %8 {
      %c0_8 = arith.constant 0 : index
      %c0_9 = arith.constant 0 : index
      %12 = vector.load %arg6[%c0_8, %c0_9] : memref<2x3xf32, #tpu.memory_space<vmem>>, vector<2x3xf32>
      %13 = arith.addf %12, %2 : vector<2x3xf32>
      %c0_10 = arith.constant 0 : index
      %c0_11 = arith.constant 0 : index
      %14 = vector.load %arg6[%c0_10, %c0_11] : memref<2x3xf32, #tpu.memory_space<vmem>>, vector<2x3xf32>
      tpu.vector_store %arg6[%c0_10, %c0_11], %13 {strides = array<i32>} : memref<2x3xf32, #tpu.memory_space<vmem>>, vector<2x3xf32>,
    } else {
    }
    %c0_i32_6 = arith.constant 0 : i32
    %9 = arith.cmpi eq, %arg2, %c0_i32_6 : i32
    %10 = arith.extui %9 : i1 to i32
    %c0_i32_7 = arith.constant 0 : i32
    %11 = arith.cmpi ne, %10, %c0_i32_7 : i32
    scf.if %11 {
      %c0_8 = arith.constant 0 : index
      %c0_9 = arith.constant 0 : index
      %12 = vector.load %arg6[%c0_8, %c0_9] : memref<2x3xf32, #tpu.memory_space<vmem>>, vector<2x3xf32>
      %cst_10 = arith.constant 0.000000e+00 : f32
      %13 = vector.broadcast %cst_10 : f32 to vector<2x3xf32>
      %14 = arith.maximumf %12, %13 : vector<2x3xf32>
      %c0_11 = arith.constant 0 : index
      %c0_12 = arith.constant 0 : index
      %15 = vector.load %arg6[%c0_11, %c0_12] : memref<2x3xf32, #tpu.memory_space<vmem>>, vector<2x3xf32>
      tpu.vector_store %arg6[%c0_11, %c0_12], %14 {strides = array<i32>} : memref<2x3xf32, #tpu.memory_space<vmem>>, vector<2x3xf32>,
    } else {
    }
    return
  }
  func.func @transform_0(%arg0: i32, %arg1: i32, %arg2: i32) -> (i32, i32) {
    %c0_i32 = arith.constant 0 : i32
    return %arg0, %arg2 : i32, i32
  }
  func.func @transform_1(%arg0: i32, %arg1: i32, %arg2: i32) -> (i32, i32) {
    %c0_i32 = arith.constant 0 : i32
    return %arg2, %arg1 : i32, i32
  }
  func.func @transform_2(%arg0: i32, %arg1: i32, %arg2: i32) -> (i32, i32) {
    %c0_i32 = arith.constant 0 : i32
    %c0_i32_0 = arith.constant 0 : i32
    return %c0_i32, %arg1 : i32, i32
  }
  func.func @transform_3(%arg0: i32, %arg1: i32, %arg2: i32) -> (i32, i32) {
    %c0_i32 = arith.constant 0 : i32
    return %arg0, %arg1 : i32, i32
  }
}

</mosaic_0001>

<llo_original>
// kernel: tpu_custom_call.1
$region0: #{tpu_custom_call.1}
  #allocation0 [shape = 'u32[]', space=smem, size = 0x4, offset = 0x4, fixed_abs, tag = 'smem constant byte address 0x4 - core index']
  #allocation1 [shape = 'u32[144,128]{1,0:T(1,128)}', space=vmem, size = 0x12000, scoped, tag = 'internal scratch']
  %s0 = inlined_call_operand.vmem [shape: f32[2,5], index: 0, kind: input, shape index: {}]
  %s1 = inlined_call_operand.vmem [shape: f32[5,3], index: 1, kind: input, shape index: {}]
  %s2 = inlined_call_operand.vmem [shape: f32[1,3], index: 2, kind: input, shape index: {}]
  %s3 = inlined_call_operand.hbm [shape: f32[2,3], index: 3, kind: output, shape index: {}]
  %s4 = sld [smem:[#allocation0]]
  $region34: #{tpu_custom_call.1} parent=0
    _
  %s6 = ssub.s32 1, %s4
  %s7 = scalar_select 0, %s6, %s4
  $region1: #{tpu_custom_call.1} parent=0
    #allocation2 [shape = 'u8[1024]{0}', space=vmem, size = 0x400, scoped, tag = 'output window, operand 0, single buffered']
    #allocation3 [shape = 's32[1]{0}', space=sflag, size = 0x4, scoped, tag = 'scoped memory for tpu_custom_call.1']
    %8 = vsyncpa [#allocation3], 0
    // Predicated region
    $region2: #{tpu_custom_call.1} parent=1 // pred_check
      _
    $region3: #{tpu_custom_call.1} parent=1 // pred_check_branch
      %10 = sbr.rel (0) target = $region5
    $region4: #{tpu_custom_call.1} parent=1 // pred_region
      _
    $region5: #{tpu_custom_call.1} parent=1 // pred_fallthru
      _
    // Predicated region
    $region6: #{tpu_custom_call.1} parent=1 // pred_check
      _
    $region7: #{tpu_custom_call.1} parent=1 // pred_check_branch
      %12 = sbr.rel (0) target = $region9
    $region8: #{tpu_custom_call.1} parent=1 // pred_region
      _
    $region9: #{tpu_custom_call.1} parent=1 // pred_fallthru
      _
    // Predicated region
    $region10: #{tpu_custom_call.1} parent=1 // pred_check
      _
    $region11: #{tpu_custom_call.1} parent=1 // pred_check_branch
      %14 = sbr.rel (0) target = $region13
    $region12: #{tpu_custom_call.1} parent=1 // pred_region
      _
    $region13: #{tpu_custom_call.1} parent=1 // pred_fallthru
      _
    %v15 = vld [vmem:[%s0] sm:$0x3]
    %v16 = vld [vmem:[%s1] sm:$0x1f]
    %vm17 = vcmask 39936
    %v19 = vsel %vm17, %v15, 0
    %vm21 = vcmask 1044480
    %v23 = vsel %vm21, %v16, 0
    %25 = vmatprep.subr.mxu0 0.0
    %26 = vmatpush1.msra.mxu0 0.0
    %27 = vmatprep.subr.mxu0 0.0
    %28 = vmatpush1.msra.mxu0 0.0
    %29 = vmatprep.subr.mxu0 0.0
    %30 = vmatpush1.msra.mxu0 0.0
    %31 = vmatprep.subr.mxu0 0.0
    %32 = vmatpush1.msra.mxu0 0.0
    %33 = vmatprep.subr.mxu0 0.0
    %34 = vmatpush1.msra.mxu0 0.0
    %35 = vmatprep.subr.mxu0 0.0
    %36 = vmatpush1.msra.mxu0 0.0
    %37 = vmatprep.subr.mxu0 0.0
    %38 = vmatpush1.msra.mxu0 0.0
    %39 = vmatprep.subr.mxu0 0.0
    %40 = vmatpush1.msra.mxu0 0.0
    %41 = vmatprep.subr.mxu0 0.0
    %42 = vmatpush1.msra.mxu0 0.0
    %43 = vmatprep.subr.mxu0 0.0
    %44 = vmatpush1.msra.mxu0 0.0
    %45 = vmatprep.subr.mxu0 0.0
    %46 = vmatpush1.msra.mxu0 0.0
    %47 = vmatprep.subr.mxu0 0.0
    %48 = vmatpush1.msra.mxu0 0.0
    %49 = vmatprep.subr.mxu0 0.0
    %50 = vmatpush1.msra.mxu0 0.0
    %51 = vmatprep.subr.mxu0 0.0
    %52 = vmatpush1.msra.mxu0 0.0
    %53 = vmatprep.subr.mxu0 0.0
    %54 = vmatpush1.msra.mxu0 0.0
    %55 = vmatprep.subr.mxu0 0.0
    %56 = vmatpush1.msra.mxu0 %v23
    %57 = vmatprep.subr.mxu0 0.0
    %58 = vmatpush2.msra.mxu0 0.0
    %59 = vmatprep.subr.mxu0 0.0
    %60 = vmatpush2.msra.mxu0 0.0
    %61 = vmatprep.subr.mxu0 0.0
    %62 = vmatpush2.msra.mxu0 0.0
    %63 = vmatprep.subr.mxu0 0.0
    %64 = vmatpush2.msra.mxu0 0.0
    %65 = vmatprep.subr.mxu0 0.0
    %66 = vmatpush2.msra.mxu0 0.0
    %67 = vmatprep.subr.mxu0 0.0
    %68 = vmatpush2.msra.mxu0 0.0
    %69 = vmatprep.subr.mxu0 0.0
    %70 = vmatpush2.msra.mxu0 0.0
    %71 = vmatprep.subr.mxu0 0.0
    %72 = vmatpush2.msra.mxu0 0.0
    %73 = vmatprep.subr.mxu0 0.0
    %74 = vmatpush2.msra.mxu0 0.0
    %75 = vmatprep.subr.mxu0 0.0
    %76 = vmatpush2.msra.mxu0 0.0
    %77 = vmatprep.subr.mxu0 0.0
    %78 = vmatpush2.msra.mxu0 0.0
    %79 = vmatprep.subr.mxu0 0.0
    %80 = vmatpush2.msra.mxu0 0.0
    %81 = vmatprep.subr.mxu0 0.0
    %82 = vmatpush2.msra.mxu0 0.0
    %83 = vmatprep.subr.mxu0 0.0
    %84 = vmatpush2.msra.mxu0 0.0
    %85 = vmatprep.subr.mxu0 0.0
    %86 = vmatpush2.msra.mxu0 0.0
    %87 = vmatprep.subr.mxu0 0.0
    %88 = vmatpush2.msra.mxu0 0.0
    %89 = vmatprep.mubr.f32.mxu0 0.0
    %90 = vmatmul.mubr.f32.gmra.mxu0 %v19
    %v91 = vpop.f32.mrf.mxu0
    %v92 = vadd.f32 0.0, %v91
    %v93 = vpop.f32.mrf.mxu0
    %94 = vdwg.mxu0
    %p95 = scmp.eq.s32.totalorder 0, 0
    // Predicated region
    $region14: #{tpu_custom_call.1} parent=1 // pred_check
      %p96 = pneg %p95
    $region15: #{tpu_custom_call.1} parent=1 // pred_check_branch
      %98 = sbr.rel (%p96) target = $region17
    $region16: #{tpu_custom_call.1} parent=1 // pred_region
      %v99 = vld [vmem:[%s2] sm:$0x1]
      %v101 = vlaneseq
      %v102 = vshrl.u32 %v101, 7
      %v103 = vsub.s32 0, %v102
      %v104 = vrot.slane %v99, %v103
      %v106 = vadd.f32 %v104, %v92
      %vm107 = vcmask 17408
      %108 = vst.msk [vmem:[#allocation2] sm:$0x3] %vm107, %v106
    $region17: #{tpu_custom_call.1} parent=1 // pred_fallthru
      _
    %p109 = scmp.gt.s32.totalorder 0, 0
    // Predicated region
    $region18: #{tpu_custom_call.1} parent=1 // pred_check
      %p110 = pneg %p109
    $region19: #{tpu_custom_call.1} parent=1 // pred_check_branch
      %112 = sbr.rel (%p110) target = $region21
    $region20: #{tpu_custom_call.1} parent=1 // pred_region
      %v113 = vld [vmem:[#allocation2] sm:$0x3]
      %v114 = vadd.f32 %v113, %v92
      %vm115 = vcmask 17408
      %116 = vst.msk [vmem:[#allocation2] sm:$0x3] %vm115, %v114
    $region21: #{tpu_custom_call.1} parent=1 // pred_fallthru
      _
    // Predicated region
    $region22: #{tpu_custom_call.1} parent=1 // pred_check
      %p117 = pneg %p95
    $region23: #{tpu_custom_call.1} parent=1 // pred_check_branch
      %119 = sbr.rel (%p117) target = $region25
    $region24: #{tpu_custom_call.1} parent=1 // pred_region
      %v120 = vld [vmem:[#allocation2] sm:$0x3]
      %v121 = vmax.f32 %v120, 0.0
      %vm122 = vcmask 17408
      %123 = vst.msk [vmem:[#allocation2] sm:$0x3] %vm122, %v121
    $region25: #{tpu_custom_call.1} parent=1 // pred_fallthru
      _
    // Predicated region
    $region26: #{tpu_custom_call.1} parent=1 // pred_check
      _
    $region27: #{tpu_custom_call.1} parent=1 // pred_check_branch
      %125 = sbr.rel (0) target = $region29
    $region28: #{tpu_custom_call.1} parent=1 // pred_region
      %s127 = ssub.s32 32, 32
      %128 = vsyncadd [#allocation3], %s127
      %s130 = sshll.u32 [#allocation2], 4
      %s131 = int_to_ptr.vmem [resolvable:$true] %s130
      %133 = dma.vmem_to_hbm [thread:$0]  %s131, 32, %s3, [#allocation3]
    $region29: #{tpu_custom_call.1} parent=1 // pred_fallthru
      _
    // Predicated region
    $region30: #{tpu_custom_call.1} parent=1 // pred_check
      _
    $region31: #{tpu_custom_call.1} parent=1 // pred_check_branch
      %135 = sbr.rel (0) target = $region33
    $region32: #{tpu_custom_call.1} parent=1 // pred_region
      %136 = dma.done [#allocation3], 32
    $region33: #{tpu_custom_call.1} parent=1 // pred_fallthru
      _
    %137 = vsyncpa [#allocation3], 1

</llo_original>
